<compile_context>
chip_gen: v6e
topology: v6e:2x2x1
jax: 0.10.0
libtpu: 0.0.40
codegen_flags: <defaults>
</compile_context>

<pallas_src>
import jax
import jax.numpy as jnp
from jax.experimental import pallas as pl
from jax.experimental.pallas import tpu as pltpu


# ----------------------------- kernel helpers ------------------------------

def _causal_dilated_conv(h, wp, b, K, d, tmod):
    """Causal dilated conv as one im2col matmul.

    h:    (C_in, B*L)  f32 activation (batch packed on lanes)
    wp:   (C_out, K*C_in) bf16 im2col'ed weight (tap-major columns)
    b:    (C_out, 1)   f32 bias
    tmod: (1, B*L)     int32 time-within-batch-segment index
    Computes y[o, t] = b[o] + sum_k sum_c w[o,c,k] * h[c, t - d*(K-1-k)]
    with zeros for shifted-out positions (per batch segment).
    """
    C_in, BL = h.shape
    S = d * (K - 1)                               # max causal left-shift
    if S > 0:
        hpad = jnp.concatenate([jnp.zeros((C_in, S), h.dtype), h], axis=1)
    else:
        hpad = h

    cols = []
    for k in range(K):                            # K tiny & static -> unrolled
        shift = d * (K - 1 - k)
        if shift == 0:
            xs = h
        else:
            xs = hpad[:, S - shift:S - shift + BL]      # static lane slice
            # zero the first `shift` steps of every batch segment (causality
            # must not leak across the packed batch boundary)
            xs = jnp.where(tmod >= shift, xs, 0.0)
        cols.append(xs)
    xp = cols[0] if K == 1 else jnp.concatenate(cols, axis=0)  # (K*C_in, BL)

    y = jnp.dot(wp, xp.astype(wp.dtype), preferred_element_type=jnp.float32)
    return y + b


def _make_tcn_kernel(K, layer_cfgs):
    """Fused full-network kernel.  layer_cfgs: tuple of (dilation, has_down)."""

    def kernel(x_ref, tmod_ref, *refs):
        out_ref = refs[-1]
        params = refs[:-1]

        tmod = tmod_ref[...]                       # (1, BL) int32
        h = x_ref[...].astype(jnp.float32)         # (C0, BL)

        idx = 0
        for dil, has_down in layer_cfgs:
            w1, b1, w2, b2 = params[idx:idx + 4]
            idx += 4
            if has_down:
                wd, bd = params[idx:idx + 2]
                idx += 2

            h1 = jnp.maximum(
                _causal_dilated_conv(h, w1[...], b1[...], K, dil, tmod), 0.0)
            # dropout1 / dropout2 are identity at inference time.
            h2 = jnp.maximum(
                _causal_dilated_conv(h1, w2[...], b2[...], K, dil, tmod), 0.0)

            if has_down:                           # 1x1 conv residual path
                res = jnp.dot(wd[...], h.astype(wd.dtype),
                              preferred_element_type=jnp.float32) + bd[...]
            else:
                res = h
            h = jnp.maximum(h2 + res, 0.0)

        out_ref[...] = h.astype(out_ref.dtype)

    return kernel


# ----------------------------- wrapper --------------------------------------

def temporal_conv_net(x, all_params, kernel_size):
    """Full TemporalConvNet.  x: (B, C_in, L) -> (B, C_out_last, L)."""
    B, C0, L = x.shape
    BL = B * L

    # Pack batch onto the lane axis: (C0, B*L), lane-dense.
    x2 = jnp.transpose(x, (1, 0, 2)).reshape(C0, BL)
    # Per-lane "time within its batch segment" index, used for causal masks.
    tmod = (jnp.arange(BL, dtype=jnp.int32) % L).reshape(1, BL)

    inputs = [x2, tmod]
    layer_cfgs = []
    for p, dil in all_params:
        inputs += [p["w1"].astype(jnp.bfloat16), p["b1"],
                   p["w2"].astype(jnp.bfloat16), p["b2"]]
        has_down = "wd" in p
        if has_down:
            inputs += [p["wd"].astype(jnp.bfloat16), p["bd"]]
        layer_cfgs.append((dil, has_down))

    C_last = all_params[-1][0]["w1"].shape[0]
    kernel = _make_tcn_kernel(kernel_size, tuple(layer_cfgs))

    vmem = pl.BlockSpec(memory_space=pltpu.MemorySpace.VMEM)
    out2 = pl.pallas_call(
        kernel,
        out_shape=jax.ShapeDtypeStruct((C_last, BL), x.dtype),
        in_specs=[vmem] * len(inputs),
        out_specs=vmem,
    )(*inputs)

    return jnp.transpose(out2.reshape(C_last, B, L), (1, 0, 2))


# ----------------------------- parameter init ------------------------------

def init_params(key, num_inputs, num_channels, dilation_sizes, kernel_size):
    """Synthetic init mirroring TemporalBlock.__init__ / init_weights.

    Conv weights ~ N(0, 0.01) (as in init_weights).  PyTorch weight_norm's
    default init sets g = ||v|| per output channel, so the effective weight
    equals v exactly; we use v directly (avoids the 0/0 hazard of
    materialising g * v / ||v||).

    Weights are stored pre-im2col'ed as (C_out, K*C_in), tap-major columns,
    matching the in-kernel X' stacking order.
    """
    def im2col(w):  # (C_out, C_in, K) -> (C_out, K*C_in)
        c_out, c_in, k = w.shape
        return jnp.transpose(w, (0, 2, 1)).reshape(c_out, k * c_in)

    all_params = []
    for i, (c_out, dil) in enumerate(zip(num_channels, dilation_sizes)):
        c_in = num_inputs if i == 0 else num_channels[i - 1]
        key, k1, k2, k3, k4, k5, k6 = jax.random.split(key, 7)

        v1 = 0.01 * jax.random.normal(k1, (c_out, c_in, kernel_size), jnp.float32)
        v2 = 0.01 * jax.random.normal(k2, (c_out, c_out, kernel_size), jnp.float32)

        p = {
            "w1": im2col(v1),
            "b1": 0.01 * jax.random.normal(k3, (c_out, 1), jnp.float32),
            "w2": im2col(v2),
            "b2": 0.01 * jax.random.normal(k4, (c_out, 1), jnp.float32),
        }
        if c_in != c_out:             # downsample = Conv1d(c_in, c_out, 1)
            p["wd"] = 0.01 * jax.random.normal(k5, (c_out, c_in), jnp.float32)
            p["bd"] = 0.01 * jax.random.normal(k6, (c_out, 1), jnp.float32)
        all_params.append((p, dil))
    return all_params


# ----------------------------- main -----------------------------------------

if __name__ == "__main__":
    B, num_inputs, L = 2, 4, 128          # B*L = 256 -> lane-dense tiles
    num_channels = (8, 16)
    dilation_sizes = (1, 2)
    kernel_size = 2

    key = jax.random.PRNGKey(0)
    kx, kp = jax.random.split(key)

    x = jax.random.normal(kx, (B, num_inputs, L), jnp.float32)
    all_params = init_params(kp, num_inputs, num_channels, dilation_sizes,
                             kernel_size)

    out = temporal_conv_net(x, all_params, kernel_size)
    out = jax.block_until_ready(out)

    assert out.shape == (B, num_channels[-1], L)
    assert out.dtype == jnp.float32
    print("KERNEL_OK")
</pallas_src>

<mosaic_0001>
module attributes {stable_mosaic.version = 11 : i64} {
  func.func @kernel(%arg0: memref<4x256xf32, #tpu.memory_space<vmem>>, %arg1: memref<1x256xi32, #tpu.memory_space<vmem>>, %arg2: memref<8x8xbf16, #tpu.memory_space<vmem>>, %arg3: memref<8x1xf32, #tpu.memory_space<vmem>>, %arg4: memref<8x16xbf16, #tpu.memory_space<vmem>>, %arg5: memref<8x1xf32, #tpu.memory_space<vmem>>, %arg6: memref<8x4xbf16, #tpu.memory_space<vmem>>, %arg7: memref<8x1xf32, #tpu.memory_space<vmem>>, %arg8: memref<16x16xbf16, #tpu.memory_space<vmem>>, %arg9: memref<16x1xf32, #tpu.memory_space<vmem>>, %arg10: memref<16x32xbf16, #tpu.memory_space<vmem>>, %arg11: memref<16x1xf32, #tpu.memory_space<vmem>>, %arg12: memref<16x8xbf16, #tpu.memory_space<vmem>>, %arg13: memref<16x1xf32, #tpu.memory_space<vmem>>, %arg14: memref<16x256xf32, #tpu.memory_space<vmem>>) attributes {dimension_semantics = [], scalar_prefetch = 0 : i64, scratch_operands = 0 : i64, tpu.core_type = #tpu.core_type<tc>} {
    %c0 = arith.constant 0 : index
    %c0_0 = arith.constant 0 : index
    %0 = vector.load %arg1[%c0, %c0_0] : memref<1x256xi32, #tpu.memory_space<vmem>>, vector<1x256xi32>
    %c0_1 = arith.constant 0 : index
    %c0_2 = arith.constant 0 : index
    %1 = vector.load %arg0[%c0_1, %c0_2] : memref<4x256xf32, #tpu.memory_space<vmem>>, vector<4x256xf32>
    %c0_3 = arith.constant 0 : index
    %c0_4 = arith.constant 0 : index
    %2 = vector.load %arg2[%c0_3, %c0_4] : memref<8x8xbf16, #tpu.memory_space<vmem>>, vector<8x8xbf16>
    %c0_5 = arith.constant 0 : index
    %c0_6 = arith.constant 0 : index
    %3 = vector.load %arg3[%c0_5, %c0_6] : memref<8x1xf32, #tpu.memory_space<vmem>>, vector<8x1xf32>
    %cst = arith.constant 0.000000e+00 : f32
    %4 = vector.broadcast %cst : f32 to vector<4x1xf32>
    %5 = tpu.concatenate %4, %1 in 1 : vector<4x1xf32>, vector<4x256xf32> -> vector<4x257xf32>
    %6 = vector.extract_strided_slice %5 {offsets = [0, 0], sizes = [4, 256], strides = [1, 1]} : vector<4x257xf32> to vector<4x256xf32>
    %c1_i32 = arith.constant 1 : i32
    %7 = vector.broadcast %c1_i32 : i32 to vector<1x256xi32>
    %8 = arith.cmpi sge, %0, %7 : vector<1x256xi32>
    %cst_7 = arith.constant 0.000000e+00 : f32
    %9 = vector.shape_cast %8 : vector<1x256xi1> to vector<1x256xi1>
    %10 = vector.broadcast %9 : vector<1x256xi1> to vector<4x256xi1>
    %11 = vector.broadcast %cst_7 : f32 to vector<4x256xf32>
    %12 = arith.select %10, %6, %11 : vector<4x256xi1>, vector<4x256xf32>
    %13 = tpu.concatenate %12, %1 in 0 : vector<4x256xf32>, vector<4x256xf32> -> vector<8x256xf32>
    %14 = arith.truncf %13 : vector<8x256xf32> to vector<8x256xbf16>
    %cst_8 = arith.constant dense<0.000000e+00> : vector<8x256xf32>
    %15 = tpu.matmul %2, %14, %cst_8 {dimension_numbers = #tpu.dot_dimension_numbers<[1], [0], [0], [1], [0, 0, 1, 1], [], []>} : vector<8x8xbf16>, vector<8x256xbf16>, vector<8x256xf32> -> vector<8x256xf32>
    %16 = vector.broadcast %3 : vector<8x1xf32> to vector<8x256xf32>
    %17 = arith.addf %15, %16 : vector<8x256xf32>
    %cst_9 = arith.constant 0.000000e+00 : f32
    %18 = vector.broadcast %cst_9 : f32 to vector<8x256xf32>
    %19 = arith.maximumf %17, %18 : vector<8x256xf32>
    %c0_10 = arith.constant 0 : index
    %c0_11 = arith.constant 0 : index
    %20 = vector.load %arg4[%c0_10, %c0_11] : memref<8x16xbf16, #tpu.memory_space<vmem>>, vector<8x16xbf16>
    %c0_12 = arith.constant 0 : index
    %c0_13 = arith.constant 0 : index
    %21 = vector.load %arg5[%c0_12, %c0_13] : memref<8x1xf32, #tpu.memory_space<vmem>>, vector<8x1xf32>
    %cst_14 = arith.constant 0.000000e+00 : f32
    %22 = vector.broadcast %cst_14 : f32 to vector<8x1xf32>
    %23 = tpu.concatenate %22, %19 in 1 : vector<8x1xf32>, vector<8x256xf32> -> vector<8x257xf32>
    %24 = vector.extract_strided_slice %23 {offsets = [0, 0], sizes = [8, 256], strides = [1, 1]} : vector<8x257xf32> to vector<8x256xf32>
    %c1_i32_15 = arith.constant 1 : i32
    %25 = vector.broadcast %c1_i32_15 : i32 to vector<1x256xi32>
    %26 = arith.cmpi sge, %0, %25 : vector<1x256xi32>
    %cst_16 = arith.constant 0.000000e+00 : f32
    %27 = vector.shape_cast %26 : vector<1x256xi1> to vector<1x256xi1>
    %28 = vector.broadcast %27 : vector<1x256xi1> to vector<8x256xi1>
    %29 = vector.broadcast %cst_16 : f32 to vector<8x256xf32>
    %30 = arith.select %28, %24, %29 : vector<8x256xi1>, vector<8x256xf32>
    %31 = tpu.concatenate %30, %19 in 0 : vector<8x256xf32>, vector<8x256xf32> -> vector<16x256xf32>
    %32 = arith.truncf %31 : vector<16x256xf32> to vector<16x256xbf16>
    %cst_17 = arith.constant dense<0.000000e+00> : vector<8x256xf32>
    %33 = tpu.matmul %20, %32, %cst_17 {dimension_numbers = #tpu.dot_dimension_numbers<[1], [0], [0], [1], [0, 0, 1, 1], [], []>} : vector<8x16xbf16>, vector<16x256xbf16>, vector<8x256xf32> -> vector<8x256xf32>
    %34 = vector.broadcast %21 : vector<8x1xf32> to vector<8x256xf32>
    %35 = arith.addf %33, %34 : vector<8x256xf32>
    %cst_18 = arith.constant 0.000000e+00 : f32
    %36 = vector.broadcast %cst_18 : f32 to vector<8x256xf32>
    %37 = arith.maximumf %35, %36 : vector<8x256xf32>
    %c0_19 = arith.constant 0 : index
    %c0_20 = arith.constant 0 : index
    %38 = vector.load %arg6[%c0_19, %c0_20] : memref<8x4xbf16, #tpu.memory_space<vmem>>, vector<8x4xbf16>
    %39 = arith.truncf %1 : vector<4x256xf32> to vector<4x256xbf16>
    %cst_21 = arith.constant dense<0.000000e+00> : vector<8x256xf32>
    %40 = tpu.matmul %38, %39, %cst_21 {dimension_numbers = #tpu.dot_dimension_numbers<[1], [0], [0], [1], [0, 0, 1, 1], [], []>} : vector<8x4xbf16>, vector<4x256xbf16>, vector<8x256xf32> -> vector<8x256xf32>
    %c0_22 = arith.constant 0 : index
    %c0_23 = arith.constant 0 : index
    %41 = vector.load %arg7[%c0_22, %c0_23] : memref<8x1xf32, #tpu.memory_space<vmem>>, vector<8x1xf32>
    %42 = vector.broadcast %41 : vector<8x1xf32> to vector<8x256xf32>
    %43 = arith.addf %40, %42 : vector<8x256xf32>
    %44 = arith.addf %37, %43 : vector<8x256xf32>
    %cst_24 = arith.constant 0.000000e+00 : f32
    %45 = vector.broadcast %cst_24 : f32 to vector<8x256xf32>
    %46 = arith.maximumf %44, %45 : vector<8x256xf32>
    %c0_25 = arith.constant 0 : index
    %c0_26 = arith.constant 0 : index
    %47 = vector.load %arg8[%c0_25, %c0_26] : memref<16x16xbf16, #tpu.memory_space<vmem>>, vector<16x16xbf16>
    %c0_27 = arith.constant 0 : index
    %c0_28 = arith.constant 0 : index
    %48 = vector.load %arg9[%c0_27, %c0_28] : memref<16x1xf32, #tpu.memory_space<vmem>>, vector<16x1xf32>
    %cst_29 = arith.constant 0.000000e+00 : f32
    %49 = vector.broadcast %cst_29 : f32 to vector<8x2xf32>
    %50 = tpu.concatenate %49, %46 in 1 : vector<8x2xf32>, vector<8x256xf32> -> vector<8x258xf32>
    %51 = vector.extract_strided_slice %50 {offsets = [0, 0], sizes = [8, 256], strides = [1, 1]} : vector<8x258xf32> to vector<8x256xf32>
    %c2_i32 = arith.constant 2 : i32
    %52 = vector.broadcast %c2_i32 : i32 to vector<1x256xi32>
    %53 = arith.cmpi sge, %0, %52 : vector<1x256xi32>
    %cst_30 = arith.constant 0.000000e+00 : f32
    %54 = vector.shape_cast %53 : vector<1x256xi1> to vector<1x256xi1>
    %55 = vector.broadcast %54 : vector<1x256xi1> to vector<8x256xi1>
    %56 = vector.broadcast %cst_30 : f32 to vector<8x256xf32>
    %57 = arith.select %55, %51, %56 : vector<8x256xi1>, vector<8x256xf32>
    %58 = tpu.concatenate %57, %46 in 0 : vector<8x256xf32>, vector<8x256xf32> -> vector<16x256xf32>
    %59 = arith.truncf %58 : vector<16x256xf32> to vector<16x256xbf16>
    %cst_31 = arith.constant dense<0.000000e+00> : vector<16x256xf32>
    %60 = tpu.matmul %47, %59, %cst_31 {dimension_numbers = #tpu.dot_dimension_numbers<[1], [0], [0], [1], [0, 0, 1, 1], [], []>} : vector<16x16xbf16>, vector<16x256xbf16>, vector<16x256xf32> -> vector<16x256xf32>
    %61 = vector.broadcast %48 : vector<16x1xf32> to vector<16x256xf32>
    %62 = arith.addf %60, %61 : vector<16x256xf32>
    %cst_32 = arith.constant 0.000000e+00 : f32
    %63 = vector.broadcast %cst_32 : f32 to vector<16x256xf32>
    %64 = arith.maximumf %62, %63 : vector<16x256xf32>
    %c0_33 = arith.constant 0 : index
    %c0_34 = arith.constant 0 : index
    %65 = vector.load %arg10[%c0_33, %c0_34] : memref<16x32xbf16, #tpu.memory_space<vmem>>, vector<16x32xbf16>
    %c0_35 = arith.constant 0 : index
    %c0_36 = arith.constant 0 : index
    %66 = vector.load %arg11[%c0_35, %c0_36] : memref<16x1xf32, #tpu.memory_space<vmem>>, vector<16x1xf32>
    %cst_37 = arith.constant 0.000000e+00 : f32
    %67 = vector.broadcast %cst_37 : f32 to vector<16x2xf32>
    %68 = tpu.concatenate %67, %64 in 1 : vector<16x2xf32>, vector<16x256xf32> -> vector<16x258xf32>
    %69 = vector.extract_strided_slice %68 {offsets = [0, 0], sizes = [16, 256], strides = [1, 1]} : vector<16x258xf32> to vector<16x256xf32>
    %c2_i32_38 = arith.constant 2 : i32
    %70 = vector.broadcast %c2_i32_38 : i32 to vector<1x256xi32>
    %71 = arith.cmpi sge, %0, %70 : vector<1x256xi32>
    %cst_39 = arith.constant 0.000000e+00 : f32
    %72 = vector.shape_cast %71 : vector<1x256xi1> to vector<1x256xi1>
    %73 = vector.broadcast %72 : vector<1x256xi1> to vector<16x256xi1>
    %74 = vector.broadcast %cst_39 : f32 to vector<16x256xf32>
    %75 = arith.select %73, %69, %74 : vector<16x256xi1>, vector<16x256xf32>
    %76 = tpu.concatenate %75, %64 in 0 : vector<16x256xf32>, vector<16x256xf32> -> vector<32x256xf32>
    %77 = arith.truncf %76 : vector<32x256xf32> to vector<32x256xbf16>
    %cst_40 = arith.constant dense<0.000000e+00> : vector<16x256xf32>
    %78 = tpu.matmul %65, %77, %cst_40 {dimension_numbers = #tpu.dot_dimension_numbers<[1], [0], [0], [1], [0, 0, 1, 1], [], []>} : vector<16x32xbf16>, vector<32x256xbf16>, vector<16x256xf32> -> vector<16x256xf32>
    %79 = vector.broadcast %66 : vector<16x1xf32> to vector<16x256xf32>
    %80 = arith.addf %78, %79 : vector<16x256xf32>
    %cst_41 = arith.constant 0.000000e+00 : f32
    %81 = vector.broadcast %cst_41 : f32 to vector<16x256xf32>
    %82 = arith.maximumf %80, %81 : vector<16x256xf32>
    %c0_42 = arith.constant 0 : index
    %c0_43 = arith.constant 0 : index
    %83 = vector.load %arg12[%c0_42, %c0_43] : memref<16x8xbf16, #tpu.memory_space<vmem>>, vector<16x8xbf16>
    %84 = arith.truncf %46 : vector<8x256xf32> to vector<8x256xbf16>
    %cst_44 = arith.constant dense<0.000000e+00> : vector<16x256xf32>
    %85 = tpu.matmul %83, %84, %cst_44 {dimension_numbers = #tpu.dot_dimension_numbers<[1], [0], [0], [1], [0, 0, 1, 1], [], []>} : vector<16x8xbf16>, vector<8x256xbf16>, vector<16x256xf32> -> vector<16x256xf32>
    %c0_45 = arith.constant 0 : index
    %c0_46 = arith.constant 0 : index
    %86 = vector.load %arg13[%c0_45, %c0_46] : memref<16x1xf32, #tpu.memory_space<vmem>>, vector<16x1xf32>
    %87 = vector.broadcast %86 : vector<16x1xf32> to vector<16x256xf32>
    %88 = arith.addf %85, %87 : vector<16x256xf32>
    %89 = arith.addf %82, %88 : vector<16x256xf32>
    %cst_47 = arith.constant 0.000000e+00 : f32
    %90 = vector.broadcast %cst_47 : f32 to vector<16x256xf32>
    %91 = arith.maximumf %89, %90 : vector<16x256xf32>
    %c0_48 = arith.constant 0 : index
    %c0_49 = arith.constant 0 : index
    %92 = vector.load %arg14[%c0_48, %c0_49] : memref<16x256xf32, #tpu.memory_space<vmem>>, vector<16x256xf32>
    tpu.vector_store %arg14[%c0_48, %c0_49], %91 {strides = array<i32>} : memref<16x256xf32, #tpu.memory_space<vmem>>, vector<16x256xf32>,
    return
  }
}

</mosaic_0001>

<llo_original>
// kernel: tpu_custom_call.1
$region0: #{tpu_custom_call.1}
  #allocation0 [shape = 'u32[]', space=smem, size = 0x4, offset = 0x4, fixed_abs, tag = 'smem constant byte address 0x4 - core index']
  #allocation1 [shape = 'u32[144,128]{1,0:T(1,128)}', space=vmem, size = 0x12000, scoped, tag = 'internal scratch']
  %s0 = inlined_call_operand.vmem [shape: f32[4,256], index: 0, kind: input, shape index: {}]
  %s1 = inlined_call_operand.vmem [shape: s32[1,256], index: 1, kind: input, shape index: {}]
  %s2 = inlined_call_operand.vmem [shape: bf16[8,8], index: 2, kind: input, shape index: {}]
  %s3 = inlined_call_operand.vmem [shape: f32[8,1], index: 3, kind: input, shape index: {}]
  %s4 = inlined_call_operand.vmem [shape: bf16[8,16], index: 4, kind: input, shape index: {}]
  %s5 = inlined_call_operand.vmem [shape: f32[8,1], index: 5, kind: input, shape index: {}]
  %s6 = inlined_call_operand.vmem [shape: bf16[8,4], index: 6, kind: input, shape index: {}]
  %s7 = inlined_call_operand.vmem [shape: f32[8,1], index: 7, kind: input, shape index: {}]
  %s8 = inlined_call_operand.vmem [shape: bf16[16,16], index: 8, kind: input, shape index: {}]
  %s9 = inlined_call_operand.vmem [shape: f32[16,1], index: 9, kind: input, shape index: {}]
  %s10 = inlined_call_operand.vmem [shape: bf16[16,32], index: 10, kind: input, shape index: {}]
  %s11 = inlined_call_operand.vmem [shape: f32[16,1], index: 11, kind: input, shape index: {}]
  %s12 = inlined_call_operand.vmem [shape: bf16[16,8], index: 12, kind: input, shape index: {}]
  %s13 = inlined_call_operand.vmem [shape: f32[16,1], index: 13, kind: input, shape index: {}]
  %s14 = inlined_call_operand.hbm [shape: f32[16,256], index: 14, kind: output, shape index: {}]
  %s15 = sld [smem:[#allocation0]]
  $region66: #{tpu_custom_call.1} parent=0
    _
  %s17 = ssub.s32 1, %s15
  %s18 = scalar_select 0, %s17, %s15
  $region1: #{tpu_custom_call.1} parent=0
    #allocation2 [shape = 'u8[16384]{0}', space=vmem, size = 0x4000, scoped, tag = 'output window, operand 0, single buffered']
    #allocation3 [shape = 's32[1]{0}', space=sflag, size = 0x4, scoped, tag = 'scoped memory for tpu_custom_call.1']
    %19 = vsyncpa [#allocation3], 0
    // Predicated region
    $region2: #{tpu_custom_call.1} parent=1 // pred_check
      _
    $region3: #{tpu_custom_call.1} parent=1 // pred_check_branch
      %21 = sbr.rel (0) target = $region5
    $region4: #{tpu_custom_call.1} parent=1 // pred_region
      _
    $region5: #{tpu_custom_call.1} parent=1 // pred_fallthru
      _
    // Predicated region
    $region6: #{tpu_custom_call.1} parent=1 // pred_check
      _
    $region7: #{tpu_custom_call.1} parent=1 // pred_check_branch
      %23 = sbr.rel (0) target = $region9
    $region8: #{tpu_custom_call.1} parent=1 // pred_region
      _
    $region9: #{tpu_custom_call.1} parent=1 // pred_fallthru
      _
    // Predicated region
    $region10: #{tpu_custom_call.1} parent=1 // pred_check
      _
    $region11: #{tpu_custom_call.1} parent=1 // pred_check_branch
      %25 = sbr.rel (0) target = $region13
    $region12: #{tpu_custom_call.1} parent=1 // pred_region
      _
    $region13: #{tpu_custom_call.1} parent=1 // pred_fallthru
      _
    // Predicated region
    $region14: #{tpu_custom_call.1} parent=1 // pred_check
      _
    $region15: #{tpu_custom_call.1} parent=1 // pred_check_branch
      %27 = sbr.rel (0) target = $region17
    $region16: #{tpu_custom_call.1} parent=1 // pred_region
      _
    $region17: #{tpu_custom_call.1} parent=1 // pred_fallthru
      _
    // Predicated region
    $region18: #{tpu_custom_call.1} parent=1 // pred_check
      _
    $region19: #{tpu_custom_call.1} parent=1 // pred_check_branch
      %29 = sbr.rel (0) target = $region21
    $region20: #{tpu_custom_call.1} parent=1 // pred_region
      _
    $region21: #{tpu_custom_call.1} parent=1 // pred_fallthru
      _
    // Predicated region
    $region22: #{tpu_custom_call.1} parent=1 // pred_check
      _
    $region23: #{tpu_custom_call.1} parent=1 // pred_check_branch
      %31 = sbr.rel (0) target = $region25
    $region24: #{tpu_custom_call.1} parent=1 // pred_region
      _
    $region25: #{tpu_custom_call.1} parent=1 // pred_fallthru
      _
    // Predicated region
    $region26: #{tpu_custom_call.1} parent=1 // pred_check
      _
    $region27: #{tpu_custom_call.1} parent=1 // pred_check_branch
      %33 = sbr.rel (0) target = $region29
    $region28: #{tpu_custom_call.1} parent=1 // pred_region
      _
    $region29: #{tpu_custom_call.1} parent=1 // pred_fallthru
      _
    // Predicated region
    $region30: #{tpu_custom_call.1} parent=1 // pred_check
      _
    $region31: #{tpu_custom_call.1} parent=1 // pred_check_branch
      %35 = sbr.rel (0) target = $region33
    $region32: #{tpu_custom_call.1} parent=1 // pred_region
      _
    $region33: #{tpu_custom_call.1} parent=1 // pred_fallthru
      _
    // Predicated region
    $region34: #{tpu_custom_call.1} parent=1 // pred_check
      _
    $region35: #{tpu_custom_call.1} parent=1 // pred_check_branch
      %37 = sbr.rel (0) target = $region37
    $region36: #{tpu_custom_call.1} parent=1 // pred_region
      _
    $region37: #{tpu_custom_call.1} parent=1 // pred_fallthru
      _
    // Predicated region
    $region38: #{tpu_custom_call.1} parent=1 // pred_check
      _
    $region39: #{tpu_custom_call.1} parent=1 // pred_check_branch
      %39 = sbr.rel (0) target = $region41
    $region40: #{tpu_custom_call.1} parent=1 // pred_region
      _
    $region41: #{tpu_custom_call.1} parent=1 // pred_fallthru
      _
    // Predicated region
    $region42: #{tpu_custom_call.1} parent=1 // pred_check
      _
    $region43: #{tpu_custom_call.1} parent=1 // pred_check_branch
      %41 = sbr.rel (0) target = $region45
    $region44: #{tpu_custom_call.1} parent=1 // pred_region
      _
    $region45: #{tpu_custom_call.1} parent=1 // pred_fallthru
      _
    // Predicated region
    $region46: #{tpu_custom_call.1} parent=1 // pred_check
      _
    $region47: #{tpu_custom_call.1} parent=1 // pred_check_branch
      %43 = sbr.rel (0) target = $region49
    $region48: #{tpu_custom_call.1} parent=1 // pred_region
      _
    $region49: #{tpu_custom_call.1} parent=1 // pred_fallthru
      _
    // Predicated region
    $region50: #{tpu_custom_call.1} parent=1 // pred_check
      _
    $region51: #{tpu_custom_call.1} parent=1 // pred_check_branch
      %45 = sbr.rel (0) target = $region53
    $region52: #{tpu_custom_call.1} parent=1 // pred_region
      _
    $region53: #{tpu_custom_call.1} parent=1 // pred_fallthru
      _
    // Predicated region
    $region54: #{tpu_custom_call.1} parent=1 // pred_check
      _
    $region55: #{tpu_custom_call.1} parent=1 // pred_check_branch
      %47 = sbr.rel (0) target = $region57
    $region56: #{tpu_custom_call.1} parent=1 // pred_region
      _
    $region57: #{tpu_custom_call.1} parent=1 // pred_fallthru
      _
    %v49 = vld [vmem:[%s1] sm:$0x3]
    %v50 = vld [vmem:[%s0] sm:$0xff]
    %v51 = vld [vmem:[%s2] sm:$0xf]
    %v52 = vld [vmem:[%s3] sm:$0xff]
    %v54 = vcombine.high %v50, %v50
    %55 = vrot.lane.b32.xlu0 %v50, 1
    %v56 = vpop.permute.xlu0 %55
    %57 = vrot.lane.b32.xlu0 %v54, 1
    %v58 = vpop.permute.xlu0 %57
    %vm59 = vcmask 7168
    %v60 = vsel %vm59, %v56, %v58
    %v63 = vsel %vm59, 0.0, %v56
    %vm64 = vcmp.ge.s32.totalorder %v49, 1
    %v65 = vsel %vm64, 1, 0
    %v66 = vlaneseq
    %v67 = vshrl.u32 %v66, 7
    %v68 = vsub.s32 0, %v67
    %v69 = vrot.slane %v65, %v68
    %v70 = vlaneseq
    %v71 = vshrl.u32 %v70, 7
    %v72 = vsub.s32 1, %v71
    %v73 = vrot.slane %v65, %v72
    %vm74 = vcmp.eq.s32.totalorder %v69, 1
    %vm75 = vcmp.eq.s32.totalorder %v73, 1
    %v76 = vsel %vm74, %v63, 0.0
    %v77 = vsel %vm75, %v60, 0.0
    %v78 = vcombine.low %v50, %v50
    %vm80 = vcmask 1043456
    %v81 = vsel %vm80, %v76, %v78
    %v82 = vsel %vm80, %v77, %v50
    %v83 = vpack.c.bf16 %v81, %v81
    %v84 = vpack.c.bf16 %v82, %v82
    %86 = vset.pattern.permute.xlu0 0
    %87 = vperm.xlu0 %86, %v52
    %v88 = vpop.permute.xlu0 %87
    %vm90 = vcmask 64512
    %v92 = vsel %vm90, %v51, 0
    %v95 = vsel %vm80, %v83, 0
    %v98 = vsel %vm80, %v84, 0
    %100 = vmatprep.subr.bf16.mxu0 0
    %101 = vmatpush1.bf16.msra.mxu0 0
    %102 = vmatprep.subr.bf16.mxu0 0
    %103 = vmatpush1.bf16.msra.mxu0 0
    %104 = vmatprep.subr.bf16.mxu0 0
    %105 = vmatpush1.bf16.msra.mxu0 0
    %106 = vmatprep.subr.bf16.mxu0 0
    %107 = vmatpush1.bf16.msra.mxu0 0
    %108 = vmatprep.subr.bf16.mxu0 0
    %109 = vmatpush1.bf16.msra.mxu0 0
    %110 = vmatprep.subr.bf16.mxu0 0
    %111 = vmatpush1.bf16.msra.mxu0 0
    %112 = vmatprep.subr.bf16.mxu0 0
    %113 = vmatpush1.bf16.msra.mxu0 0
    %114 = vmatprep.subr.bf16.mxu0 %v98
    %115 = vmatpush1.bf16.msra.mxu0 %v95
    %116 = vmatprep.subr.bf16.mxu0 0
    %117 = vmatpush2.bf16.msra.mxu0 0
    %118 = vmatprep.subr.bf16.mxu0 0
    %119 = vmatpush2.bf16.msra.mxu0 0
    %120 = vmatprep.subr.bf16.mxu0 0
    %121 = vmatpush2.bf16.msra.mxu0 0
    %122 = vmatprep.subr.bf16.mxu0 0
    %123 = vmatpush2.bf16.msra.mxu0 0
    %124 = vmatprep.subr.bf16.mxu0 0
    %125 = vmatpush2.bf16.msra.mxu0 0
    %126 = vmatprep.subr.bf16.mxu0 0
    %127 = vmatpush2.bf16.msra.mxu0 0
    %128 = vmatprep.subr.bf16.mxu0 0
    %129 = vmatpush2.bf16.msra.mxu0 0
    %130 = vmatprep.subr.bf16.mxu0 0
    %131 = vmatpush2.bf16.msra.mxu0 0
    %132 = vmatprep.mubr.bf16.mxu0 0
    %133 = vmatmul.mubr.bf16.gmra.mxu0 %v92
    %v134 = vpop.f32.mrf.mxu0
    %v135 = vadd.f32 %v88, %v134
    %v136 = vpop.f32.mrf.mxu0
    %v137 = vadd.f32 %v88, %v136
    %v138 = vpop.f32.mrf.mxu0
    %v139 = vpop.f32.mrf.mxu0
    %140 = vdwg.mxu0
    %v141 = vmax.f32 %v135, 0.0
    %v142 = vmax.f32 %v137, 0.0
    %v143 = vld [vmem:[%s4] sm:$0xf]
    %v144 = vld [vmem:[%s5] sm:$0xff]
    %147 = vrot.lane.b32.xlu0 %v141, 1
    %v148 = vpop.permute.xlu0 %147
    %149 = vrot.lane.b32.xlu0 %v142, 1
    %v150 = vpop.permute.xlu0 %149
    %v151 = vsel %vm59, %v148, %v150
    %v154 = vsel %vm59, 0.0, %v148
    %v155 = vsel %vm74, %v154, 0.0
    %v156 = vsel %vm75, %v151, 0.0
    %v157 = vpack.c.bf16 %v141, %v155
    %v158 = vpack.c.bf16 %v142, %v156
    %160 = vset.pattern.permute.xlu0 0
    %161 = vperm.xlu0 %160, %v144
    %v162 = vpop.permute.xlu0 %161
    %vm164 = vcmask 130048
    %v166 = vsel %vm164, %v143, 0
    %168 = vmatprep.subr.bf16.mxu0 0
    %169 = vmatpush1.bf16.msra.mxu0 0
    %170 = vmatprep.subr.bf16.mxu0 0
    %171 = vmatpush1.bf16.msra.mxu0 0
    %172 = vmatprep.subr.bf16.mxu0 0
    %173 = vmatpush1.bf16.msra.mxu0 0
    %174 = vmatprep.subr.bf16.mxu0 0
    %175 = vmatpush1.bf16.msra.mxu0 0
    %176 = vmatprep.subr.bf16.mxu0 0
    %177 = vmatpush1.bf16.msra.mxu0 0
    %178 = vmatprep.subr.bf16.mxu0 0
    %179 = vmatpush1.bf16.msra.mxu0 0
    %180 = vmatprep.subr.bf16.mxu0 0
    %181 = vmatpush1.bf16.msra.mxu0 0
    %182 = vmatprep.subr.bf16.mxu0 %v158
    %183 = vmatpush1.bf16.msra.mxu0 %v157
    %184 = vmatprep.subr.bf16.mxu0 0
    %185 = vmatpush2.bf16.msra.mxu0 0
    %186 = vmatprep.subr.bf16.mxu0 0
    %187 = vmatpush2.bf16.msra.mxu0 0
    %188 = vmatprep.subr.bf16.mxu0 0
    %189 = vmatpush2.bf16.msra.mxu0 0
    %190 = vmatprep.subr.bf16.mxu0 0
    %191 = vmatpush2.bf16.msra.mxu0 0
    %192 = vmatprep.subr.bf16.mxu0 0
    %193 = vmatpush2.bf16.msra.mxu0 0
    %194 = vmatprep.subr.bf16.mxu0 0
    %195 = vmatpush2.bf16.msra.mxu0 0
    %196 = vmatprep.subr.bf16.mxu0 0
    %197 = vmatpush2.bf16.msra.mxu0 0
    %198 = vmatprep.subr.bf16.mxu0 0
    %199 = vmatpush2.bf16.msra.mxu0 0
    %200 = vmatprep.mubr.bf16.mxu0 0
    %201 = vmatmul.mubr.bf16.gmra.mxu0 %v166
    %v202 = vpop.f32.mrf.mxu0
    %v203 = vadd.f32 %v162, %v202
    %v204 = vpop.f32.mrf.mxu0
    %v205 = vadd.f32 %v162, %v204
    %v206 = vpop.f32.mrf.mxu0
    %v207 = vpop.f32.mrf.mxu0
    %208 = vdwg.mxu0
    %v209 = vmax.f32 %v203, 0.0
    %v210 = vmax.f32 %v205, 0.0
    %v211 = vld [vmem:[%s6] sm:$0xf]
    %v213 = vpack.c.bf16 %v50, %v50
    %v214 = vpack.c.bf16 %v54, %v54
    %v215 = vld [vmem:[%s7] sm:$0xff]
    %217 = vset.pattern.permute.xlu0 0
    %218 = vperm.xlu0 %217, %v215
    %v219 = vpop.permute.xlu0 %218
    %vm221 = vcmask 31744
    %v223 = vsel %vm221, %v211, 0
    %vm225 = vcmask 1041408
    %v227 = vsel %vm225, %v213, 0
    %v230 = vsel %vm225, %v214, 0
    %232 = vmatprep.subr.bf16.mxu0 0
    %233 = vmatpush1.bf16.msra.mxu0 0
    %234 = vmatprep.subr.bf16.mxu0 0
    %235 = vmatpush1.bf16.msra.mxu0 0
    %236 = vmatprep.subr.bf16.mxu0 0
    %237 = vmatpush1.bf16.msra.mxu0 0
    %238 = vmatprep.subr.bf16.mxu0 0
    %239 = vmatpush1.bf16.msra.mxu0 0
    %240 = vmatprep.subr.bf16.mxu0 0
    %241 = vmatpush1.bf16.msra.mxu0 0
    %242 = vmatprep.subr.bf16.mxu0 0
    %243 = vmatpush1.bf16.msra.mxu0 0
    %244 = vmatprep.subr.bf16.mxu0 0
    %245 = vmatpush1.bf16.msra.mxu0 0
    %246 = vmatprep.subr.bf16.mxu0 %v230
    %247 = vmatpush1.bf16.msra.mxu0 %v227
    %248 = vmatprep.subr.bf16.mxu0 0
    %249 = vmatpush2.bf16.msra.mxu0 0
    %250 = vmatprep.subr.bf16.mxu0 0
    %251 = vmatpush2.bf16.msra.mxu0 0
    %252 = vmatprep.subr.bf16.mxu0 0
    %253 = vmatpush2.bf16.msra.mxu0 0
    %254 = vmatprep.subr.bf16.mxu0 0
    %255 = vmatpush2.bf16.msra.mxu0 0
    %256 = vmatprep.subr.bf16.mxu0 0
    %257 = vmatpush2.bf16.msra.mxu0 0
    %258 = vmatprep.subr.bf16.mxu0 0
    %259 = vmatpush2.bf16.msra.mxu0 0
    %260 = vmatprep.subr.bf16.mxu0 0
    %261 = vmatpush2.bf16.msra.mxu0 0
    %262 = vmatprep.subr.bf16.mxu0 0
    %263 = vmatpush2.bf16.msra.mxu0 0
    %264 = vmatprep.mubr.bf16.mxu0 0
    %265 = vmatmul.mubr.bf16.gmra.mxu0 %v223
    %v266 = vpop.f32.mrf.mxu0
    %v267 = vadd.f32 %v219, %v266
    %v268 = vpop.f32.mrf.mxu0
    %v269 = vadd.f32 %v219, %v268
    %v270 = vpop.f32.mrf.mxu0
    %v271 = vpop.f32.mrf.mxu0
    %272 = vdwg.mxu0
    %v273 = vadd.f32 %v209, %v267
    %v274 = vadd.f32 %v210, %v269
    %v275 = vmax.f32 %v273, 0.0
    %v276 = vmax.f32 %v274, 0.0
    %v277 = vld [vmem:[%s8] sm:$0xf]
    %v278 = vld [vmem:[%s8 + $0x4] sm:$0xf]
    %v279 = vld [vmem:[%s9] sm:$0xff]
    %v280 = vld [vmem:[%s9 + $0x8] sm:$0xff]
    %283 = vrot.lane.b32.xlu0 %v275, 2
    %v284 = vpop.permute.xlu0 %283
    %285 = vrot.lane.b32.xlu0 %v276, 2
    %v286 = vpop.permute.xlu0 %285
    %vm287 = vcmask 15360
    %v288 = vsel %vm287, %v284, %v286
    %v291 = vsel %vm287, 0.0, %v284
    %vm292 = vcmp.ge.s32.totalorder %v49, 2
    %v293 = vsel %vm292, 1, 0
    %v294 = vlaneseq
    %v295 = vshrl.u32 %v294, 7
    %v296 = vsub.s32 0, %v295
    %v297 = vrot.slane %v293, %v296
    %v298 = vlaneseq
    %v299 = vshrl.u32 %v298, 7
    %v300 = vsub.s32 1, %v299
    %v301 = vrot.slane %v293, %v300
    %vm302 = vcmp.eq.s32.totalorder %v297, 1
    %vm303 = vcmp.eq.s32.totalorder %v301, 1
    %v304 = vsel %vm302, %v291, 0.0
    %v305 = vsel %vm303, %v288, 0.0
    %v306 = vpack.c.bf16 %v275, %v304
    %v307 = vpack.c.bf16 %v276, %v305
    %309 = vset.pattern.permute.xlu0 0
    %310 = vperm.xlu0 %309, %v279
    %v311 = vpop.permute.xlu0 %310
    %314 = vset.pattern.permute.xlu0 0
    %315 = vperm.xlu0 %314, %v280
    %v316 = vpop.permute.xlu0 %315
    %v320 = vunpack.c.l.b16 %v277
    %v321 = vunpack.c.l.b16 %v278
    %v322 = vpack.c.b16 %v321, %v320
    %v324 = vsel %vm164, %v322, 0
    %326 = vmatprep.subr.bf16.mxu0 0
    %327 = vmatpush1.bf16.msra.mxu0 0
    %328 = vmatprep.subr.bf16.mxu0 0
    %329 = vmatpush1.bf16.msra.mxu0 0
    %330 = vmatprep.subr.bf16.mxu0 0
    %331 = vmatpush1.bf16.msra.mxu0 0
    %332 = vmatprep.subr.bf16.mxu0 0
    %333 = vmatpush1.bf16.msra.mxu0 0
    %334 = vmatprep.subr.bf16.mxu0 0
    %335 = vmatpush1.bf16.msra.mxu0 0
    %336 = vmatprep.subr.bf16.mxu0 0
    %337 = vmatpush1.bf16.msra.mxu0 0
    %338 = vmatprep.subr.bf16.mxu0 0
    %339 = vmatpush1.bf16.msra.mxu0 0
    %340 = vmatprep.subr.bf16.mxu0 %v307
    %341 = vmatpush1.bf16.msra.mxu0 %v306
    %342 = vmatprep.subr.bf16.mxu0 0
    %343 = vmatpush2.bf16.msra.mxu0 0
    %344 = vmatprep.subr.bf16.mxu0 0
    %345 = vmatpush2.bf16.msra.mxu0 0
    %346 = vmatprep.subr.bf16.mxu0 0
    %347 = vmatpush2.bf16.msra.mxu0 0
    %348 = vmatprep.subr.bf16.mxu0 0
    %349 = vmatpush2.bf16.msra.mxu0 0
    %350 = vmatprep.subr.bf16.mxu0 0
    %351 = vmatpush2.bf16.msra.mxu0 0
    %352 = vmatprep.subr.bf16.mxu0 0
    %353 = vmatpush2.bf16.msra.mxu0 0
    %354 = vmatprep.subr.bf16.mxu0 0
    %355 = vmatpush2.bf16.msra.mxu0 0
    %356 = vmatprep.subr.bf16.mxu0 0
    %357 = vmatpush2.bf16.msra.mxu0 0
    %358 = vmatprep.mubr.bf16.mxu0 0
    %359 = vmatmul.mubr.bf16.gmra.mxu0 %v324
    %v360 = vpop.f32.mrf.mxu0
    %v361 = vadd.f32 %v311, %v360
    %v362 = vpop.f32.mrf.mxu0
    %v363 = vadd.f32 %v311, %v362
    %v364 = vpop.f32.mrf.mxu0
    %v365 = vadd.f32 %v316, %v364
    %v366 = vpop.f32.mrf.mxu0
    %v367 = vadd.f32 %v316, %v366
    %368 = vdwg.mxu0
    %v369 = vmax.f32 %v361, 0.0
    %v370 = vmax.f32 %v363, 0.0
    %v371 = vmax.f32 %v365, 0.0
    %v372 = vmax.f32 %v367, 0.0
    %v373 = vld [vmem:[%s10] sm:$0xf]
    %v374 = vld [vmem:[%s10 + $0x4] sm:$0xf]
    %v375 = vld [vmem:[%s11] sm:$0xff]
    %v376 = vld [vmem:[%s11 + $0x8] sm:$0xff]
    %381 = vrot.lane.b32.xlu0 %v369, 2
    %v382 = vpop.permute.xlu0 %381
    %383 = vrot.lane.b32.xlu0 %v370, 2
    %v384 = vpop.permute.xlu0 %383
    %385 = vrot.lane.b32.xlu0 %v371, 2
    %v386 = vpop.permute.xlu0 %385
    %387 = vrot.lane.b32.xlu0 %v372, 2
    %v388 = vpop.permute.xlu0 %387
    %v389 = vsel %vm287, %v382, %v384
    %v390 = vsel %vm287, %v386, %v388
    %v395 = vsel %vm287, 0.0, %v382
    %v396 = vsel %vm287, 0.0, %v386
    %v397 = vsel %vm302, %v395, 0.0
    %v398 = vsel %vm303, %v389, 0.0
    %v399 = vsel %vm302, %v396, 0.0
    %v400 = vsel %vm303, %v390, 0.0
    %v401 = vpack.c.bf16 %v399, %v397
    %v402 = vpack.c.bf16 %v400, %v398
    %v403 = vpack.c.bf16 %v371, %v369
    %v404 = vpack.c.bf16 %v372, %v370
    %406 = vset.pattern.permute.xlu0 0
    %407 = vperm.xlu0 %406, %v375
    %v408 = vpop.permute.xlu0 %407
    %411 = vset.pattern.permute.xlu0 0
    %412 = vperm.xlu0 %411, %v376
    %v413 = vpop.permute.xlu0 %412
    %v417 = vunpack.c.l.b16 %v373
    %v418 = vunpack.c.l.b16 %v374
    %v419 = vpack.c.b16 %v418, %v417
    %vm420 = vcmask 261120
    %v422 = vsel %vm420, %v419, 0
    %424 = vmatprep.subr.bf16.mxu0 0
    %425 = vmatpush1.bf16.msra.mxu0 0
    %426 = vmatprep.subr.bf16.mxu0 0
    %427 = vmatpush1.bf16.msra.mxu0 0
    %428 = vmatprep.subr.bf16.mxu0 0
    %429 = vmatpush1.bf16.msra.mxu0 0
    %430 = vmatprep.subr.bf16.mxu0 0
    %431 = vmatpush1.bf16.msra.mxu0 0
    %432 = vmatprep.subr.bf16.mxu0 0
    %433 = vmatpush1.bf16.msra.mxu0 0
    %434 = vmatprep.subr.bf16.mxu0 0
    %435 = vmatpush1.bf16.msra.mxu0 0
    %436 = vmatprep.subr.bf16.mxu0 %v404
    %437 = vmatpush1.bf16.msra.mxu0 %v403
    %438 = vmatprep.subr.bf16.mxu0 %v402
    %439 = vmatpush1.bf16.msra.mxu0 %v401
    %440 = vmatprep.subr.bf16.mxu0 0
    %441 = vmatpush2.bf16.msra.mxu0 0
    %442 = vmatprep.subr.bf16.mxu0 0
    %443 = vmatpush2.bf16.msra.mxu0 0
    %444 = vmatprep.subr.bf16.mxu0 0
    %445 = vmatpush2.bf16.msra.mxu0 0
    %446 = vmatprep.subr.bf16.mxu0 0
    %447 = vmatpush2.bf16.msra.mxu0 0
    %448 = vmatprep.subr.bf16.mxu0 0
    %449 = vmatpush2.bf16.msra.mxu0 0
    %450 = vmatprep.subr.bf16.mxu0 0
    %451 = vmatpush2.bf16.msra.mxu0 0
    %452 = vmatprep.subr.bf16.mxu0 0
    %453 = vmatpush2.bf16.msra.mxu0 0
    %454 = vmatprep.subr.bf16.mxu0 0
    %455 = vmatpush2.bf16.msra.mxu0 0
    %456 = vmatprep.mubr.bf16.mxu0 0
    %457 = vmatmul.mubr.bf16.gmra.mxu0 %v422
    %v458 = vpop.f32.mrf.mxu0
    %v459 = vadd.f32 %v408, %v458
    %v460 = vpop.f32.mrf.mxu0
    %v461 = vadd.f32 %v408, %v460
    %v462 = vpop.f32.mrf.mxu0
    %v463 = vadd.f32 %v413, %v462
    %v464 = vpop.f32.mrf.mxu0
    %v465 = vadd.f32 %v413, %v464
    %466 = vdwg.mxu0
    %v467 = vmax.f32 %v459, 0.0
    %v468 = vmax.f32 %v461, 0.0
    %v469 = vmax.f32 %v463, 0.0
    %v470 = vmax.f32 %v465, 0.0
    %v471 = vld [vmem:[%s12] sm:$0xf]
    %v472 = vld [vmem:[%s12 + $0x4] sm:$0xf]
    %v473 = vpack.c.bf16 %v275, %v275
    %v474 = vpack.c.bf16 %v276, %v276
    %v475 = vld [vmem:[%s13] sm:$0xff]
    %v476 = vld [vmem:[%s13 + $0x8] sm:$0xff]
    %478 = vset.pattern.permute.xlu0 0
    %479 = vperm.xlu0 %478, %v475
    %v480 = vpop.permute.xlu0 %479
    %483 = vset.pattern.permute.xlu0 0
    %484 = vperm.xlu0 %483, %v476
    %v485 = vpop.permute.xlu0 %484
    %v489 = vunpack.c.l.b16 %v471
    %v490 = vunpack.c.l.b16 %v472
    %v491 = vpack.c.b16 %v490, %v489
    %v493 = vsel %vm90, %v491, 0
    %v496 = vsel %vm80, %v473, 0
    %v499 = vsel %vm80, %v474, 0
    %501 = vmatprep.subr.bf16.mxu0 0
    %502 = vmatpush1.bf16.msra.mxu0 0
    %503 = vmatprep.subr.bf16.mxu0 0
    %504 = vmatpush1.bf16.msra.mxu0 0
    %505 = vmatprep.subr.bf16.mxu0 0
    %506 = vmatpush1.bf16.msra.mxu0 0
    %507 = vmatprep.subr.bf16.mxu0 0
    %508 = vmatpush1.bf16.msra.mxu0 0
    %509 = vmatprep.subr.bf16.mxu0 0
    %510 = vmatpush1.bf16.msra.mxu0 0
    %511 = vmatprep.subr.bf16.mxu0 0
    %512 = vmatpush1.bf16.msra.mxu0 0
    %513 = vmatprep.subr.bf16.mxu0 0
    %514 = vmatpush1.bf16.msra.mxu0 0
    %515 = vmatprep.subr.bf16.mxu0 %v499
    %516 = vmatpush1.bf16.msra.mxu0 %v496
    %517 = vmatprep.subr.bf16.mxu0 0
    %518 = vmatpush2.bf16.msra.mxu0 0
    %519 = vmatprep.subr.bf16.mxu0 0
    %520 = vmatpush2.bf16.msra.mxu0 0
    %521 = vmatprep.subr.bf16.mxu0 0
    %522 = vmatpush2.bf16.msra.mxu0 0
    %523 = vmatprep.subr.bf16.mxu0 0
    %524 = vmatpush2.bf16.msra.mxu0 0
    %525 = vmatprep.subr.bf16.mxu0 0
    %526 = vmatpush2.bf16.msra.mxu0 0
    %527 = vmatprep.subr.bf16.mxu0 0
    %528 = vmatpush2.bf16.msra.mxu0 0
    %529 = vmatprep.subr.bf16.mxu0 0
    %530 = vmatpush2.bf16.msra.mxu0 0
    %531 = vmatprep.subr.bf16.mxu0 0
    %532 = vmatpush2.bf16.msra.mxu0 0
    %533 = vmatprep.mubr.bf16.mxu0 0
    %534 = vmatmul.mubr.bf16.gmra.mxu0 %v493
    %v535 = vpop.f32.mrf.mxu0
    %v536 = vadd.f32 %v480, %v535
    %v537 = vpop.f32.mrf.mxu0
    %v538 = vadd.f32 %v480, %v537
    %v539 = vpop.f32.mrf.mxu0
    %v540 = vadd.f32 %v485, %v539
    %v541 = vpop.f32.mrf.mxu0
    %v542 = vadd.f32 %v485, %v541
    %543 = vdwg.mxu0
    %v544 = vadd.f32 %v467, %v536
    %v545 = vadd.f32 %v468, %v538
    %v546 = vadd.f32 %v469, %v540
    %v547 = vadd.f32 %v470, %v542
    %v548 = vmax.f32 %v544, 0.0
    %v549 = vmax.f32 %v545, 0.0
    %v550 = vmax.f32 %v546, 0.0
    %v551 = vmax.f32 %v547, 0.0
    %552 = vst [vmem:[#allocation2] sm:$0xff] %v548
    %553 = vst [vmem:[#allocation2 + $0x8] sm:$0xff] %v549
    %554 = vst [vmem:[#allocation2 + $0x10] sm:$0xff] %v550
    %555 = vst [vmem:[#allocation2 + $0x18] sm:$0xff] %v551
    // Predicated region
    $region58: #{tpu_custom_call.1} parent=1 // pred_check
      _
    $region59: #{tpu_custom_call.1} parent=1 // pred_check_branch
      %557 = sbr.rel (0) target = $region61
    $region60: #{tpu_custom_call.1} parent=1 // pred_region
      %s559 = ssub.s32 512, 512
      %560 = vsyncadd [#allocation3], %s559
      %s561 = sshll.u32 [#allocation2], 4
      %s562 = int_to_ptr.vmem [resolvable:$true] %s561
      %567 = dma.vmem_to_hbm [thread:$0]  %s562, 512, %s14, [#allocation3], 256, 256, 16
    $region61: #{tpu_custom_call.1} parent=1 // pred_fallthru
      _
    // Predicated region
    $region62: #{tpu_custom_call.1} parent=1 // pred_check
      _
    $region63: #{tpu_custom_call.1} parent=1 // pred_check_branch
      %569 = sbr.rel (0) target = $region65
    $region64: #{tpu_custom_call.1} parent=1 // pred_region
      %570 = dma.done [#allocation3], 512
    $region65: #{tpu_custom_call.1} parent=1 // pred_fallthru
      _
    %571 = vsyncpa [#allocation3], 1

</llo_original>
